<compile_context>
chip_gen: v7x
topology: tpu7x:2x2x1
jax: 0.10.0
libtpu: 0.0.40
codegen_flags: <defaults>
</compile_context>

<pallas_src>
import jax
import jax.numpy as jnp
from jax.experimental import pallas as pl
from jax.experimental.pallas import tpu as pltpu


def _bmm_tt_kernel(x1_ref, x2_ref, o_ref, acc_ref):
    # x1_ref: (tp, tq) tile of x1[b]  (rows = P contraction, cols = Q)
    # x2_ref: (tr, tp) tile of x2[b]  (rows = R, cols = P contraction)
    # o_ref : (tq, tr) output tile;   acc_ref: (tq, tr) f32 accumulator
    k = pl.program_id(3)

    @pl.when(k == 0)
    def _():
        acc_ref[...] = jnp.zeros_like(acc_ref)

    # out[q, r] = sum_p x1[p, q] * x2[r, p]
    # Transposes are folded into the contraction dims (no XLU relayout).
    acc_ref[...] += jax.lax.dot_general(
        x1_ref[...],
        x2_ref[...],
        dimension_numbers=(((0,), (1,)), ((), ())),
        preferred_element_type=jnp.float32,
    )

    @pl.when(k == pl.num_programs(3) - 1)
    def _():
        o_ref[...] = acc_ref[...].astype(o_ref.dtype)


def _round_up(x, m):
    return ((x + m - 1) // m) * m


def model_forward(x1, x2, *, tq_max=256, tr_max=256, tp_max=512):
    """x1: (B, P, Q) f32, x2: (B, R, P) f32 -> (B, Q, R) f32 = x1^T @ x2^T per batch."""
    B, P, Q = x1.shape
    B2, R, P2 = x2.shape
    assert B == B2 and P == P2, "batched matmul contraction mismatch"

    # Tile selection: if a dim fits in one tile, the block spans the full dim
    # (satisfies the (8,128) layout rule via the full-dim exception and keeps
    # the toy case a single block).  Otherwise use 128-aligned tiles
    # (lane-dense output stores, full MXU passes) and zero-pad to a multiple.
    def pick(dim, tmax):
        if dim <= tmax:
            return dim, dim                     # tile == full dim, no padding
        return tmax, _round_up(dim, tmax)       # (tile, padded dim)

    tq, Qp = pick(Q, tq_max)
    tr, Rp = pick(R, tr_max)
    tp, Pp = pick(P, tp_max)

    # Zero-pad so every axis is a multiple of its tile; zeros on the padded
    # contraction (P) region contribute nothing to the accumulation.
    x1p = x1 if (Pp == P and Qp == Q) else jnp.pad(
        x1, ((0, 0), (0, Pp - P), (0, Qp - Q)))
    x2p = x2 if (Rp == R and Pp == P) else jnp.pad(
        x2, ((0, 0), (0, Rp - R), (0, Pp - P)))

    grid = (B, Qp // tq, Rp // tr, Pp // tp)

    out = pl.pallas_call(
        _bmm_tt_kernel,
        out_shape=jax.ShapeDtypeStruct((B, Qp, Rp), jnp.float32),
        grid_spec=pltpu.PrefetchScalarGridSpec(
            num_scalar_prefetch=0,
            grid=grid,
            in_specs=[
                # x1[b] tile: rows = P (contraction, grid axis 3), cols = Q (axis 1)
                pl.BlockSpec((pl.Squeezed(), tp, tq),
                             lambda b, i, j, k: (b, k, i)),
                # x2[b] tile: rows = R (grid axis 2), cols = P (contraction, axis 3)
                pl.BlockSpec((pl.Squeezed(), tr, tp),
                             lambda b, i, j, k: (b, j, k)),
            ],
            out_specs=pl.BlockSpec((pl.Squeezed(), tq, tr),
                                   lambda b, i, j, k: (b, i, j)),
            scratch_shapes=[pltpu.VMEM((tq, tr), jnp.float32)],
        ),
        compiler_params=pltpu.CompilerParams(
            # batch / Q-tiles / R-tiles are independent (megacore-shardable);
            # only the contraction axis carries the accumulator.
            dimension_semantics=("parallel", "parallel", "parallel", "arbitrary"),
        ),
    )(x1p, x2p)

    if Qp != Q or Rp != R:
        out = out[:, :Q, :R]
    return out


def _check(out, ref, tag, tol=2e-2):
    # Normalized max-error check: robust to MXU precision-mode differences
    # (default f32 matmuls may run as bf16 passes) while still catching any
    # transpose / tiling / padding bug (which would give O(1) normalized error).
    err = jnp.max(jnp.abs(out - ref)) / (jnp.max(jnp.abs(ref)) + 1e-6)
    assert float(err) < tol, f"{tag}: normalized max error {float(err)}"


if __name__ == "__main__":
    key = jax.random.PRNGKey(0)
    k1, k2, k3, k4, kw, kb = jax.random.split(key, 6)

    # Small shapes consistent with the module (torch.randn(1, 2, 2) inputs),
    # enlarged slightly to TPU-friendly sizes: B=2, P=Q=R=8.
    B, P, Q, R = 2, 8, 8, 8
    x1 = jax.random.normal(k1, (B, P, Q), dtype=jnp.float32)
    x2 = jax.random.normal(k2, (B, R, P), dtype=jnp.float32)

    # Deterministic (but unused-in-forward) nn.Linear(2, 2) parameters.
    lin_w = jax.random.normal(kw, (2, 2), dtype=jnp.float32) * 0.1
    lin_b = jax.random.normal(kb, (2,), dtype=jnp.float32) * 0.1

    out = jax.block_until_ready(model_forward(x1, x2))
    ref = jnp.einsum("bpq,brp->bqr", x1, x2)
    assert out.shape == (B, Q, R)
    _check(out, ref, "small")

    # Larger, non-multiple shapes: exercises tiling of Q/R/P, zero-padding,
    # and the f32 accumulator across the contraction grid axis.
    Bb, Pb, Qb, Rb = 2, 600, 300, 260
    xb1 = jax.random.normal(k3, (Bb, Pb, Qb), dtype=jnp.float32)
    xb2 = jax.random.normal(k4, (Bb, Rb, Pb), dtype=jnp.float32)
    outb = jax.block_until_ready(model_forward(xb1, xb2))
    refb = jnp.einsum("bpq,brp->bqr", xb1, xb2,
                      precision=jax.lax.Precision.HIGHEST)
    assert outb.shape == (Bb, Qb, Rb)
    _check(outb, refb, "tiled")

    print("KERNEL_OK")
</pallas_src>

<mosaic_0001>
module attributes {stable_mosaic.version = 11 : i64} {
  func.func @_bmm_tt_kernel(%arg0: i32, %arg1: i32, %arg2: i32, %arg3: i32, %arg4: memref<1x8x8xf32, #tpu.memory_space<vmem>>, %arg5: memref<1x8x8xf32, #tpu.memory_space<vmem>>, %arg6: memref<1x8x8xf32, #tpu.memory_space<vmem>>, %arg7: memref<8x8xf32, #tpu.memory_space<vmem>>) attributes {dimension_semantics = [#tpu.dimension_semantics<parallel>, #tpu.dimension_semantics<parallel>, #tpu.dimension_semantics<parallel>, #tpu.dimension_semantics<arbitrary>], iteration_bounds = array<i64: 2, 1, 1, 1>, scalar_prefetch = 0 : i64, scratch_operands = 1 : i64, tpu.core_type = #tpu.core_type<tc>, window_params = [{transform_indices = @transform_0, window_bounds = array<i64: 1, 8, 8>}, {transform_indices = @transform_1, window_bounds = array<i64: 1, 8, 8>}, {transform_indices = @transform_2, window_bounds = array<i64: 1, 8, 8>}]} {
    %c0_i32 = arith.constant 0 : i32
    %0 = arith.cmpi eq, %arg3, %c0_i32 : i32
    %1 = arith.extui %0 : i1 to i32
    %c0_i32_0 = arith.constant 0 : i32
    %2 = arith.cmpi ne, %1, %c0_i32_0 : i32
    scf.if %2 {
      %cst_12 = arith.constant 0.000000e+00 : f32
      %14 = vector.broadcast %cst_12 : f32 to vector<8x8xf32>
      %c0_13 = arith.constant 0 : index
      %c0_14 = arith.constant 0 : index
      %15 = vector.load %arg7[%c0_13, %c0_14] : memref<8x8xf32, #tpu.memory_space<vmem>>, vector<8x8xf32>
      tpu.vector_store %arg7[%c0_13, %c0_14], %14 {strides = array<i32>} : memref<8x8xf32, #tpu.memory_space<vmem>>, vector<8x8xf32>,
    } else {
    }
    %c0 = arith.constant 0 : index
    %c0_1 = arith.constant 0 : index
    %3 = vector.load %arg7[%c0, %c0_1] : memref<8x8xf32, #tpu.memory_space<vmem>>, vector<8x8xf32>
    %c0_2 = arith.constant 0 : index
    %c0_3 = arith.constant 0 : index
    %c0_4 = arith.constant 0 : index
    %4 = vector.load %arg4[%c0_2, %c0_3, %c0_4] : memref<1x8x8xf32, #tpu.memory_space<vmem>>, vector<1x8x8xf32>
    %5 = vector.shape_cast %4 : vector<1x8x8xf32> to vector<8x8xf32>
    %c0_5 = arith.constant 0 : index
    %c0_6 = arith.constant 0 : index
    %c0_7 = arith.constant 0 : index
    %6 = vector.load %arg5[%c0_5, %c0_6, %c0_7] : memref<1x8x8xf32, #tpu.memory_space<vmem>>, vector<1x8x8xf32>
    %7 = vector.shape_cast %6 : vector<1x8x8xf32> to vector<8x8xf32>
    %cst = arith.constant dense<0.000000e+00> : vector<8x8xf32>
    %8 = tpu.matmul %5, %7, %cst {dimension_numbers = #tpu.dot_dimension_numbers<[0], [1], [1], [0], [0, 1, 1, 0], [], []>} : vector<8x8xf32>, vector<8x8xf32>, vector<8x8xf32> -> vector<8x8xf32>
    %9 = arith.addf %3, %8 : vector<8x8xf32>
    %c0_8 = arith.constant 0 : index
    %c0_9 = arith.constant 0 : index
    %10 = vector.load %arg7[%c0_8, %c0_9] : memref<8x8xf32, #tpu.memory_space<vmem>>, vector<8x8xf32>
    tpu.vector_store %arg7[%c0_8, %c0_9], %9 {strides = array<i32>} : memref<8x8xf32, #tpu.memory_space<vmem>>, vector<8x8xf32>,
    %c0_i32_10 = arith.constant 0 : i32
    %11 = arith.cmpi eq, %arg3, %c0_i32_10 : i32
    %12 = arith.extui %11 : i1 to i32
    %c0_i32_11 = arith.constant 0 : i32
    %13 = arith.cmpi ne, %12, %c0_i32_11 : i32
    scf.if %13 {
      %c0_12 = arith.constant 0 : index
      %c0_13 = arith.constant 0 : index
      %14 = vector.load %arg7[%c0_12, %c0_13] : memref<8x8xf32, #tpu.memory_space<vmem>>, vector<8x8xf32>
      %c0_14 = arith.constant 0 : index
      %c0_15 = arith.constant 0 : index
      %c0_16 = arith.constant 0 : index
      %15 = vector.load %arg6[%c0_14, %c0_15, %c0_16] : memref<1x8x8xf32, #tpu.memory_space<vmem>>, vector<1x8x8xf32>
      %16 = vector.shape_cast %15 : vector<1x8x8xf32> to vector<8x8xf32>
      %17 = vector.shape_cast %14 : vector<8x8xf32> to vector<1x8x8xf32>
      tpu.vector_store %arg6[%c0_14, %c0_15, %c0_16], %17 {strides = array<i32>} : memref<1x8x8xf32, #tpu.memory_space<vmem>>, vector<1x8x8xf32>,
    } else {
    }
    return
  }
  func.func @transform_0(%arg0: i32, %arg1: i32, %arg2: i32, %arg3: i32) -> (i32, i32, i32) {
    %c0_i32 = arith.constant 0 : i32
    return %arg0, %arg3, %arg1 : i32, i32, i32
  }
  func.func @transform_1(%arg0: i32, %arg1: i32, %arg2: i32, %arg3: i32) -> (i32, i32, i32) {
    %c0_i32 = arith.constant 0 : i32
    return %arg0, %arg2, %arg3 : i32, i32, i32
  }
  func.func @transform_2(%arg0: i32, %arg1: i32, %arg2: i32, %arg3: i32) -> (i32, i32, i32) {
    %c0_i32 = arith.constant 0 : i32
    return %arg0, %arg1, %arg2 : i32, i32, i32
  }
}

</mosaic_0001>

<llo_original>
// kernel: tpu_custom_call.1
$region0: #{tpu_custom_call.1}
  #allocation0 [shape = 'u32[]', space=smem, size = 0x4, offset = 0x4, fixed_abs, tag = 'smem constant byte address 0x4 - core index']
  #allocation1 [shape = 'u32[144,128]{1,0:T(1,128)}', space=vmem, size = 0x12000, scoped, tag = 'internal scratch']
  #allocation2 [shape = 'f32[8,8]{1,0:T(8,128)}', space=vmem, size = 0x1000, scoped, tag = 'scratch operand']
  %s0 = inlined_call_operand.hbm [shape: f32[2,8,8], index: 0, kind: input, shape index: {}]
  %s1 = inlined_call_operand.hbm [shape: f32[2,8,8], index: 1, kind: input, shape index: {}]
  %s2 = inlined_call_operand.hbm [shape: f32[2,8,8], index: 2, kind: output, shape index: {}]
  %s3 = sld [smem:[#allocation0]]
  $region57: #{tpu_custom_call.1} parent=0
    _
  %s5 = ssub.s32 1, %s3
  %s6 = scalar_select 0, %s5, %s3
  $region1: #{tpu_custom_call.1} parent=0
    #allocation3 [shape = 'u8[8192]{0}', space=vmem, size = 0x2000, scoped, tag = 'input window, operand 0']
    #allocation4 [shape = 's32[2]{0}', space=sflag, size = 0x8, scoped, tag = 'scoped memory for tpu_custom_call.1']
    #allocation5 [shape = 's32[2]{0}', space=sflag, size = 0x8, scoped, tag = 'scoped memory for tpu_custom_call.1']
    #allocation6 [shape = 'u8[8192]{0}', space=vmem, size = 0x2000, scoped, tag = 'input window, operand 1']
    #allocation7 [shape = 's32[2]{0}', space=sflag, size = 0x8, scoped, tag = 'scoped memory for tpu_custom_call.1']
    #allocation8 [shape = 'u8[8192]{0}', space=vmem, size = 0x2000, scoped, tag = 'output window, operand 0']
    %7 = vsyncpa [#allocation4], 0
    %s8 = scalar_lea.sflag [#allocation4], 1
    %9 = vsyncpa %s8, 0
    %10 = vsyncpa [#allocation7], 0
    %s11 = scalar_lea.sflag [#allocation7], 1
    %12 = vsyncpa %s11, 0
    %13 = vsyncpa [#allocation5], 0
    %s14 = scalar_lea.sflag [#allocation5], 1
    %15 = vsyncpa %s14, 0
    loop: start=0, step=1, limit=4
    $region2: #{tpu_custom_call.1} parent=1 // loop_pre_header
      _
    $region3: #{tpu_custom_call.1} parent=1 // loop_header
      %s17 = sphi 0, %s21
      %p18 = scmp.ge.s32.totalorder %s17, 4
      %s24 = sphi 0, %s50
      %s25 = sphi 0, %s46
      %s26 = sphi 0, %s42
      %s27 = sphi 0, %s38
      %s28 = sphi 0, %s24
      %s29 = sphi 0, %s25
      %s30 = sphi 0, %s26
      %s31 = sphi 0, %s27
      %s32 = sphi 0, %s28
      %s33 = sphi 0, %s29
      %s34 = sphi 0, %s30
      %s35 = sphi 0, %s31
      %s57 = sphi 0, %s59
      %s60 = sphi 0, %s57
      %s61 = sphi 0, %s60
      %s77 = sphi 0, %s61
      %s87 = sphi 0, %s89
      %s90 = sphi 0, %s87
      %s91 = sphi 0, %s90
      %s107 = sphi 0, %s91
      %s117 = sphi 0, %s119
      %s120 = sphi 0, %s117
      %s121 = sphi 0, %s120
      %s137 = sphi 0, %s121
    $region4: #{tpu_custom_call.1} parent=1 // loop_header_branch
      %20 = sbr.rel (%p18) target = $region8
    $region5: #{tpu_custom_call.1} parent=1 // loop_body
      %s22 = ssub.s32 %s17, 1
      %s23 = ssub.s32 %s17, 2
      %s36 = sadd.s32 1, %s27
      %p37 = scmp.ge.s32.totalorder %s36, 1
      %s38 = scalar_select %p37, 0, %s36
      %s39 = sadd.s32 1, %s26
      %s40 = scalar_select %p37, %s39, %s26
      %p41 = scmp.ge.s32.totalorder %s40, 1
      %s42 = scalar_select %p41, 0, %s40
      %s43 = sadd.s32 1, %s25
      %s44 = scalar_select %p41, %s43, %s25
      %p45 = scmp.ge.s32.totalorder %s44, 1
      %s46 = scalar_select %p45, 0, %s44
      %s47 = sadd.s32 1, %s24
      %s48 = scalar_select %p45, %s47, %s24
      %p49 = scmp.ge.s32.totalorder %s48, 2
      %s50 = scalar_select %p49, 0, %s48
      %s51 = ssub.s32 %s24, %s50
      %s52 = ssub.s32 %s27, %s38
      %s53 = sor.u32 %s51, %s52
      %s54 = ssub.s32 %s25, %s46
      %s55 = sor.u32 %s53, %s54
      %p56 = scmp.eq.s32.totalorder %s55, 0
      %s58 = sadd.s32 %s57, 1
      %s59 = scalar_select %p56, %s57, %s58
      %p62 = pneg %p56
      %p63 = scmp.eq.s32.totalorder %s17, 1
      %p64 = por %p62, %p63
      %p65 = scmp.ne.s32.totalorder %s57, %s60
      %p66 = scmp.eq.s32.totalorder %s17, 0
      %p67 = por %p65, %p66
      %p68 = scmp.ne.s32.totalorder %s57, %s60
      %p69 = scmp.eq.s32.totalorder %s22, 1
      %p70 = por %p68, %p69
      %p71 = scmp.ne.s32.totalorder %s60, %s61
      %p72 = scmp.eq.s32.totalorder %s22, 0
      %p73 = por %p71, %p72
      %p74 = scmp.ne.s32.totalorder %s60, %s61
      %p75 = scmp.eq.s32.totalorder %s23, 1
      %p76 = por %p74, %p75
      %p78 = scmp.ne.s32.totalorder %s61, %s77
      %p79 = scmp.eq.s32.totalorder %s23, 0
      %p80 = por %p78, %p79
      %s81 = ssub.s32 %s24, %s50
      %s82 = ssub.s32 %s26, %s42
      %s83 = sor.u32 %s81, %s82
      %s84 = ssub.s32 %s27, %s38
      %s85 = sor.u32 %s83, %s84
      %p86 = scmp.eq.s32.totalorder %s85, 0
      %s88 = sadd.s32 %s87, 1
      %s89 = scalar_select %p86, %s87, %s88
      %p92 = pneg %p86
      %p93 = scmp.eq.s32.totalorder %s17, 1
      %p94 = por %p92, %p93
      %p95 = scmp.ne.s32.totalorder %s87, %s90
      %p96 = scmp.eq.s32.totalorder %s17, 0
      %p97 = por %p95, %p96
      %p98 = scmp.ne.s32.totalorder %s87, %s90
      %p99 = scmp.eq.s32.totalorder %s22, 1
      %p100 = por %p98, %p99
      %p101 = scmp.ne.s32.totalorder %s90, %s91
      %p102 = scmp.eq.s32.totalorder %s22, 0
      %p103 = por %p101, %p102
      %p104 = scmp.ne.s32.totalorder %s90, %s91
      %p105 = scmp.eq.s32.totalorder %s23, 1
      %p106 = por %p104, %p105
      %p108 = scmp.ne.s32.totalorder %s91, %s107
      %p109 = scmp.eq.s32.totalorder %s23, 0
      %p110 = por %p108, %p109
      %s111 = ssub.s32 %s24, %s50
      %s112 = ssub.s32 %s25, %s46
      %s113 = sor.u32 %s111, %s112
      %s114 = ssub.s32 %s26, %s42
      %s115 = sor.u32 %s113, %s114
      %p116 = scmp.eq.s32.totalorder %s115, 0
      %s118 = sadd.s32 %s117, 1
      %s119 = scalar_select %p116, %s117, %s118
      %p122 = pneg %p116
      %p123 = scmp.eq.s32.totalorder %s17, 1
      %p124 = por %p122, %p123
      %p125 = scmp.ne.s32.totalorder %s117, %s120
      %p126 = scmp.eq.s32.totalorder %s17, 0
      %p127 = por %p125, %p126
      %p128 = scmp.ne.s32.totalorder %s117, %s120
      %p129 = scmp.eq.s32.totalorder %s22, 1
      %p130 = por %p128, %p129
      %p131 = scmp.ne.s32.totalorder %s120, %s121
      %p132 = scmp.eq.s32.totalorder %s22, 0
      %p133 = por %p131, %p132
      %p134 = scmp.ne.s32.totalorder %s120, %s121
      %p135 = scmp.eq.s32.totalorder %s23, 1
      %p136 = por %p134, %p135
      %p138 = scmp.ne.s32.totalorder %s121, %s137
      %p139 = scmp.eq.s32.totalorder %s23, 0
      %p140 = por %p138, %p139
      %p141 = scmp.le.s32.totalorder 1, %s17
      %p142 = scmp.lt.s32.totalorder %s17, 3
      %p143 = pnand %p141, %p142
      %p144 = pneg %p143
      // Predicated region
      $region9: #{tpu_custom_call.1} parent=5 // pred_check
        _
      $region10: #{tpu_custom_call.1} parent=5 // pred_check_branch
        %146 = sbr.rel (%p143) target = $region12
      $region11: #{tpu_custom_call.1} parent=5 // pred_region
        %s147 = ssub.s32 %s17, 1
      $region12: #{tpu_custom_call.1} parent=5 // pred_fallthru
        _
      %p148 = scmp.lt.s32.totalorder %s17, 2
      // Predicated region
      $region13: #{tpu_custom_call.1} parent=5 // pred_check
        %p149 = pneg %p148
      $region14: #{tpu_custom_call.1} parent=5 // pred_check_branch
        %151 = sbr.rel (%p149) target = $region16
      $region15: #{tpu_custom_call.1} parent=5 // pred_region
        // Predicated region
        $region17: #{tpu_custom_call.1} parent=15 // pred_check
          %p152 = pneg %p67
        $region18: #{tpu_custom_call.1} parent=15 // pred_check_branch
          %154 = sbr.rel (%p152) target = $region20
        $region19: #{tpu_custom_call.1} parent=15 // pred_region
          %s155 = sand.u32 %s57, 1
          %s156 = scalar_lea.sflag [#allocation4], %s155
          %s157 = sand.u32 %s57, 1
          %s158 = smul.addr %s157, 8
          %s159 = scalar_lea.vmem [#allocation3], %s158
          %s161 = ssub.s32 128, 128
          %162 = vsyncadd %s156, %s161
          %s163 = sadd.s32 %s25, %s27
          %s164 = sadd.s32 %s163, %s24
          %s165 = smul.addr %s164, 128
          %s166 = scalar_lea.hbm %s0, %s165
          %s168 = sshll.u32 %s159, 4
          %s169 = int_to_ptr.vmem [resolvable:$true] %s168
          %171 = dma.hbm_to_vmem [thread:$0]  %s166, 128, %s169, %s156
        $region20: #{tpu_custom_call.1} parent=15 // pred_fallthru
          _
        // Predicated region
        $region21: #{tpu_custom_call.1} parent=15 // pred_check
          %p172 = pneg %p97
        $region22: #{tpu_custom_call.1} parent=15 // pred_check_branch
          %174 = sbr.rel (%p172) target = $region24
        $region23: #{tpu_custom_call.1} parent=15 // pred_region
          %s175 = sand.u32 %s87, 1
          %s176 = scalar_lea.sflag [#allocation7], %s175
          %s177 = sand.u32 %s87, 1
          %s178 = smul.addr %s177, 8
          %s179 = scalar_lea.vmem [#allocation6], %s178
          %s181 = ssub.s32 128, 128
          %182 = vsyncadd %s176, %s181
          %s183 = sadd.s32 %s27, %s26
          %s184 = sadd.s32 %s183, %s24
          %s185 = smul.addr %s184, 128
          %s186 = scalar_lea.hbm %s1, %s185
          %s188 = sshll.u32 %s179, 4
          %s189 = int_to_ptr.vmem [resolvable:$true] %s188
          %191 = dma.hbm_to_vmem [thread:$0]  %s186, 128, %s189, %s176
        $region24: #{tpu_custom_call.1} parent=15 // pred_fallthru
          _
      $region16: #{tpu_custom_call.1} parent=5 // pred_fallthru
        _
      %p192 = scmp.le.s32.totalorder 1, %s17
      %p193 = scmp.lt.s32.totalorder %s17, 3
      %p194 = pnand %p192, %p193
      %p195 = pneg %p194
      // Predicated region
      $region25: #{tpu_custom_call.1} parent=5 // pred_check
        _
      $region26: #{tpu_custom_call.1} parent=5 // pred_check_branch
        %197 = sbr.rel (%p194) target = $region28
      $region27: #{tpu_custom_call.1} parent=5 // pred_region
        %s198 = ssub.s32 %s17, 1
        %s199 = sand.u32 %s60, 1
        %s200 = scalar_lea.sflag [#allocation4], %s199
        %s201 = sand.u32 %s60, 1
        %s202 = smul.addr %s201, 8
        %s203 = scalar_lea.vmem [#allocation3], %s202
        // Predicated region
        $region29: #{tpu_custom_call.1} parent=27 // pred_check
          %p204 = pneg %p73
        $region30: #{tpu_custom_call.1} parent=27 // pred_check_branch
          %206 = sbr.rel (%p204) target = $region32
        $region31: #{tpu_custom_call.1} parent=27 // pred_region
          %207 = dma.done %s200, 128
        $region32: #{tpu_custom_call.1} parent=27 // pred_fallthru
          _
        %s208 = sand.u32 %s90, 1
        %s209 = scalar_lea.sflag [#allocation7], %s208
        %s210 = sand.u32 %s90, 1
        %s211 = smul.addr %s210, 8
        %s212 = scalar_lea.vmem [#allocation6], %s211
        // Predicated region
        $region33: #{tpu_custom_call.1} parent=27 // pred_check
          %p213 = pneg %p103
        $region34: #{tpu_custom_call.1} parent=27 // pred_check_branch
          %215 = sbr.rel (%p213) target = $region36
        $region35: #{tpu_custom_call.1} parent=27 // pred_region
          %216 = dma.done %s209, 128
        $region36: #{tpu_custom_call.1} parent=27 // pred_fallthru
          _
        %s217 = sand.u32 %s60, 1
        %s218 = scalar_lea.sflag [#allocation4], %s217
        %s219 = sand.u32 %s60, 1
        %s220 = smul.addr %s219, 8
        %s221 = scalar_lea.vmem [#allocation3], %s220
        %p222 = pneg %p73
        %p223 = pneg %p70
        %s224 = sand.u32 %s90, 1
        %s225 = scalar_lea.sflag [#allocation7], %s224
        %s226 = sand.u32 %s90, 1
        %s227 = smul.addr %s226, 8
        %s228 = scalar_lea.vmem [#allocation6], %s227
        %p229 = pneg %p103
        %p230 = pneg %p100
        %p231 = pneg %p133
        %p232 = pneg %p130
        %s233 = sand.u32 %s120, 1
        %s234 = scalar_lea.sflag [#allocation5], %s233
        %s235 = sand.u32 %s120, 1
        %s236 = smul.addr %s235, 8
        %s237 = scalar_lea.vmem [#allocation8], %s236
        %p238 = scmp.eq.s32.totalorder %s31, 0
        // Predicated region
        $region37: #{tpu_custom_call.1} parent=27 // pred_check
          %p239 = pneg %p238
        $region38: #{tpu_custom_call.1} parent=27 // pred_check_branch
          %241 = sbr.rel (%p239) target = $region40
        $region39: #{tpu_custom_call.1} parent=27 // pred_region
          %vm242 = vcmask 64512
          %243 = vst.msk [vmem:[#allocation2] sm:$0xff] %vm242, 0.0
        $region40: #{tpu_custom_call.1} parent=27 // pred_fallthru
          _
        %v244 = vld [vmem:[#allocation2] sm:$0xff]
        %v245 = vld [vmem:[%s203] sm:$0xff]
        %v246 = vld [vmem:[%s212] sm:$0xff]
        %247 = vxpose.xlu0.b32.start [1/16] %v245, 128
        %248 = vxpose.xlu0.b32.cont [2/16] 0.0, 128
        %249 = vxpose.xlu0.b32.cont [3/16] 0.0, 128
        %250 = vxpose.xlu0.b32.cont [4/16] 0.0, 128
        %251 = vxpose.xlu0.b32.cont [5/16] 0.0, 128
        %252 = vxpose.xlu0.b32.cont [6/16] 0.0, 128
        %253 = vxpose.xlu0.b32.cont [7/16] 0.0, 128
        %254 = vxpose.xlu0.b32.cont [8/16] 0.0, 128
        %255 = vxpose.xlu0.b32.cont [9/16] 0.0, 128
        %256 = vxpose.xlu0.b32.cont [10/16] 0.0, 128
        %257 = vxpose.xlu0.b32.cont [11/16] 0.0, 128
        %258 = vxpose.xlu0.b32.cont [12/16] 0.0, 128
        %259 = vxpose.xlu0.b32.cont [13/16] 0.0, 128
        %260 = vxpose.xlu0.b32.cont [14/16] 0.0, 128
        %261 = vxpose.xlu0.b32.cont [15/16] 0.0, 128
        %262 = vxpose.xlu0.b32.end [16/16] 0.0, 128
        %v263 = vpop.trf.xlu0
        %v264 = vpop.trf.xlu0
        %v265 = vpop.trf.xlu0
        %v266 = vpop.trf.xlu0
        %v267 = vpop.trf.xlu0
        %v268 = vpop.trf.xlu0
        %v269 = vpop.trf.xlu0
        %v270 = vpop.trf.xlu0
        %v271 = vpop.trf.xlu0
        %v272 = vpop.trf.xlu0
        %v273 = vpop.trf.xlu0
        %v274 = vpop.trf.xlu0
        %v275 = vpop.trf.xlu0
        %v276 = vpop.trf.xlu0
        %v277 = vpop.trf.xlu0
        %v278 = vpop.trf.xlu0
        %vm279 = vcmask 64512
        %v281 = vsel %vm279, %v263, 0
        %v284 = vsel %vm279, %v246, 0
        %286 = vmatprep.subr.mxu0 0.0
        %287 = vmatpush1.xpose.msra.mxu0 %v284
        %288 = vmatprep.subr.mxu0 0.0
        %289 = vmatpush1.xpose.msra.mxu0 0.0
        %290 = vmatprep.subr.mxu0 0.0
        %291 = vmatpush1.xpose.msra.mxu0 0.0
        %292 = vmatprep.subr.mxu0 0.0
        %293 = vmatpush1.xpose.msra.mxu0 0.0
        %294 = vmatprep.subr.mxu0 0.0
        %295 = vmatpush1.xpose.msra.mxu0 0.0
        %296 = vmatprep.subr.mxu0 0.0
        %297 = vmatpush1.xpose.msra.mxu0 0.0
        %298 = vmatprep.subr.mxu0 0.0
        %299 = vmatpush1.xpose.msra.mxu0 0.0
        %300 = vmatprep.subr.mxu0 0.0
        %301 = vmatpush1.xpose.msra.mxu0 0.0
        %302 = vmatprep.subr.mxu0 0.0
        %303 = vmatpush1.xpose.msra.mxu0 0.0
        %304 = vmatprep.subr.mxu0 0.0
        %305 = vmatpush1.xpose.msra.mxu0 0.0
        %306 = vmatprep.subr.mxu0 0.0
        %307 = vmatpush1.xpose.msra.mxu0 0.0
        %308 = vmatprep.subr.mxu0 0.0
        %309 = vmatpush1.xpose.msra.mxu0 0.0
        %310 = vmatprep.subr.mxu0 0.0
        %311 = vmatpush1.xpose.msra.mxu0 0.0
        %312 = vmatprep.subr.mxu0 0.0
        %313 = vmatpush1.xpose.msra.mxu0 0.0
        %314 = vmatprep.subr.mxu0 0.0
        %315 = vmatpush1.xpose.msra.mxu0 0.0
        %316 = vmatprep.subr.mxu0 0.0
        %317 = vmatpush1.xpose.msra.mxu0 0.0
        %318 = vmatprep.subr.mxu0 0.0
        %319 = vmatpush1.xpose.msra.mxu0 0.0
        %320 = vmatprep.subr.mxu0 0.0
        %321 = vmatpush1.xpose.msra.mxu0 0.0
        %322 = vmatprep.subr.mxu0 0.0
        %323 = vmatpush1.xpose.msra.mxu0 0.0
        %324 = vmatprep.subr.mxu0 0.0
        %325 = vmatpush1.xpose.msra.mxu0 0.0
        %326 = vmatprep.subr.mxu0 0.0
        %327 = vmatpush1.xpose.msra.mxu0 0.0
        %328 = vmatprep.subr.mxu0 0.0
        %329 = vmatpush1.xpose.msra.mxu0 0.0
        %330 = vmatprep.subr.mxu0 0.0
        %331 = vmatpush1.xpose.msra.mxu0 0.0
        %332 = vmatprep.subr.mxu0 0.0
        %333 = vmatpush1.xpose.msra.mxu0 0.0
        %334 = vmatprep.subr.mxu0 0.0
        %335 = vmatpush1.xpose.msra.mxu0 0.0
        %336 = vmatprep.subr.mxu0 0.0
        %337 = vmatpush1.xpose.msra.mxu0 0.0
        %338 = vmatprep.subr.mxu0 0.0
        %339 = vmatpush1.xpose.msra.mxu0 0.0
        %340 = vmatprep.subr.mxu0 0.0
        %341 = vmatpush1.xpose.msra.mxu0 0.0
        %342 = vmatprep.subr.mxu0 0.0
        %343 = vmatpush1.xpose.msra.mxu0 0.0
        %344 = vmatprep.subr.mxu0 0.0
        %345 = vmatpush1.xpose.msra.mxu0 0.0
        %346 = vmatprep.subr.mxu0 0.0
        %347 = vmatpush1.xpose.msra.mxu0 0.0
        %348 = vmatprep.subr.mxu0 0.0
        %349 = vmatpush1.xpose.msra.mxu0 0.0
        %350 = vmatprep.mubr.f32.mxu0 0.0
        %351 = vmatmul.mubr.f32.gmra.mrb[0].mxu0 %v281
        %v352 = vpop.f32.mrb[0].mxu0
        %v353 = vadd.f32 0.0, %v352
        %v354 = vpop.f32.mrb[0].mxu0
        %355 = vdwg.mxu0
        %v356 = vadd.f32 %v244, %v353
        %357 = vst.msk [vmem:[#allocation2] sm:$0xff] %vm279, %v356
        // Predicated region
        $region41: #{tpu_custom_call.1} parent=27 // pred_check
          %p358 = pneg %p238
        $region42: #{tpu_custom_call.1} parent=27 // pred_check_branch
          %360 = sbr.rel (%p358) target = $region44
        $region43: #{tpu_custom_call.1} parent=27 // pred_region
          %v361 = vld [vmem:[#allocation2] sm:$0xff]
          %362 = vst.msk [vmem:[%s237] sm:$0xff] %vm279, %v361
        $region44: #{tpu_custom_call.1} parent=27 // pred_fallthru
          _
        %s363 = sand.u32 %s120, 1
        %s364 = scalar_lea.sflag [#allocation5], %s363
        %s365 = sand.u32 %s120, 1
        %s366 = smul.addr %s365, 8
        %s367 = scalar_lea.vmem [#allocation8], %s366
        // Predicated region
        $region45: #{tpu_custom_call.1} parent=27 // pred_check
          %p368 = pneg %p130
        $region46: #{tpu_custom_call.1} parent=27 // pred_check_branch
          %370 = sbr.rel (%p368) target = $region48
        $region47: #{tpu_custom_call.1} parent=27 // pred_region
          %s372 = ssub.s32 128, 128
          %373 = vsyncadd %s364, %s372
          %s374 = sadd.s32 %s30, %s29
          %s375 = sadd.s32 %s374, %s28
          %s376 = smul.addr %s375, 128
          %s377 = scalar_lea.hbm %s2, %s376
          %s379 = sshll.u32 %s367, 4
          %s380 = int_to_ptr.vmem [resolvable:$true] %s379
          %382 = dma.vmem_to_hbm [thread:$0]  %s380, 128, %s377, %s364
        $region48: #{tpu_custom_call.1} parent=27 // pred_fallthru
          _
      $region28: #{tpu_custom_call.1} parent=5 // pred_fallthru
        _
      %p383 = scmp.le.s32.totalorder 2, %s17
      // Predicated region
      $region49: #{tpu_custom_call.1} parent=5 // pred_check
        %p384 = pneg %p383
      $region50: #{tpu_custom_call.1} parent=5 // pred_check_branch
        %386 = sbr.rel (%p384) target = $region52
      $region51: #{tpu_custom_call.1} parent=5 // pred_region
        %s387 = ssub.s32 %s17, 2
        // Predicated region
        $region53: #{tpu_custom_call.1} parent=51 // pred_check
          %p388 = pneg %p136
        $region54: #{tpu_custom_call.1} parent=51 // pred_check_branch
          %390 = sbr.rel (%p388) target = $region56
        $region55: #{tpu_custom_call.1} parent=51 // pred_region
          %s391 = sand.u32 %s121, 1
          %s392 = scalar_lea.sflag [#allocation5], %s391
          %s393 = sand.u32 %s121, 1
          %s394 = smul.addr %s393, 8
          %s395 = scalar_lea.vmem [#allocation8], %s394
          %396 = dma.done %s392, 128
        $region56: #{tpu_custom_call.1} parent=51 // pred_fallthru
          _
      $region52: #{tpu_custom_call.1} parent=5 // pred_fallthru
        _
    $region6: #{tpu_custom_call.1} parent=1 // loop_footer
      %s21 = sadd.s32 1, %s17
    $region7: #{tpu_custom_call.1} parent=1 // loop_footer_branch
      %16 = sbr.rel target = $region3
    $region8: #{tpu_custom_call.1} parent=1 // loop_exit
      _
    %397 = vsyncpa [#allocation4], 1
    %s398 = scalar_lea.sflag [#allocation4], 1
    %399 = vsyncpa %s398, 1
    %400 = vsyncpa [#allocation7], 1
    %s401 = scalar_lea.sflag [#allocation7], 1
    %402 = vsyncpa %s401, 1
    %403 = vsyncpa [#allocation5], 1
    %s404 = scalar_lea.sflag [#allocation5], 1
    %405 = vsyncpa %s404, 1

</llo_original>
